<compile_context>
chip_gen: v5e
topology: v5e:2x2
jax: 0.10.0
libtpu: 0.0.40
codegen_flags: <defaults>
</compile_context>

<pallas_src>
import math
import functools
import numpy as np
import jax
import jax.numpy as jnp
from jax import lax
from jax.experimental import pallas as pl
from jax.experimental.pallas import tpu as pltpu


def _round_up(x, m):
    return ((x + m - 1) // m) * m


# ----------------------------- Pallas kernel --------------------------------
def data_embedding_kernel(a_ref, gidx_ref, w_ref, tab_ref, out_ref):
    # a_ref:    (tile_m, 3*c_in)    im2col'd values (x[t-1] | x[t] | x[t+1])
    # gidx_ref: (tile_m, 5)         global indices into the fused table
    # w_ref:    (3*c_in, d_model)   conv taps flattened, VMEM resident
    # tab_ref:  (76+L, d_model)     [month|day|weekday|hour|pos] table, resident
    # out_ref:  (tile_m, d_model)
    rows = a_ref.shape[0]
    t_size = tab_ref.shape[0]

    # value embedding: single im2col matmul (circular conv, kernel=3, no bias)
    acc = jnp.dot(a_ref[...], w_ref[...], preferred_element_type=jnp.float32)

    # temporal + positional embedding: multi-hot @ table (MXU is otherwise idle).
    # The 5 index columns fall into disjoint offset segments of the table, so a
    # boolean OR of the compares followed by a single cast reproduces the sum.
    gidx = gidx_ref[...]                                        # (rows, 5) int32
    iota = lax.broadcasted_iota(jnp.int32, (rows, t_size), 1)
    hits = iota == gidx[:, 0:1]
    for c in range(1, gidx.shape[1]):
        hits = jnp.logical_or(hits, iota == gidx[:, c:c + 1])
    onehot = hits.astype(jnp.float32)
    acc = acc + jnp.dot(onehot, tab_ref[...], preferred_element_type=jnp.float32)

    # Dropout: eval-mode identity.
    out_ref[...] = acc.astype(out_ref.dtype)


# ------------------------------ wrapper --------------------------------------
@functools.partial(jax.jit, static_argnames=("block_rows",))
def data_embedding(x, x_mark, conv_w, temporal_tables, pos_table, block_rows=512):
    B, L, c_in = x.shape
    d_model = conv_w.shape[-1]
    M = B * L
    k_in = 3 * c_in

    # --- im2col for circular Conv1d(kernel=3, padding=1, padding_mode='circular')
    # out[t] = x[(t-1)%L] @ W0 + x[t] @ W1 + x[(t+1)%L] @ W2
    xm1 = jnp.roll(x, 1, axis=1)       # x[t-1] (circular, per batch element)
    xp1 = jnp.roll(x, -1, axis=1)      # x[t+1]
    a = jnp.concatenate([xm1, x, xp1], axis=-1).reshape(M, k_in)
    w2d = conv_w.reshape(k_in, d_model)            # tap-major (3, c_in, d) -> (3*c_in, d)

    # --- fused temporal + positional lookup table
    # rows: [month(13) | day(32) | weekday(7) | hour(24) | position(L)]
    month_t, day_t, weekday_t, hour_t = temporal_tables
    table = jnp.concatenate(
        [month_t, day_t, weekday_t, hour_t, pos_table[:L]], axis=0)
    t_size = table.shape[0]                        # 76 + L

    # global indices per row (truncation toward zero matches torch .long())
    idx = x_mark.astype(jnp.int32)                 # (B, L, 4)
    pos_idx = jnp.broadcast_to(jnp.arange(L, dtype=jnp.int32)[None, :], (B, L))
    gidx = jnp.stack(
        [idx[..., 0],                              # month
         13 + idx[..., 1],                         # day
         45 + idx[..., 2],                         # weekday
         52 + idx[..., 3],                         # hour
         76 + pos_idx],                            # position
        axis=-1).reshape(M, 5).astype(jnp.int32)

    # --- row tiling (biggest tile that fits comfortably; M is usually small)
    tile_m = _round_up(int(min(block_rows, _round_up(M, 8))), 8)
    m_pad = _round_up(M, tile_m)
    if m_pad != M:
        a = jnp.pad(a, ((0, m_pad - M), (0, 0)))
        gidx = jnp.pad(gidx, ((0, m_pad - M), (0, 0)))

    grid_spec = pltpu.PrefetchScalarGridSpec(
        num_scalar_prefetch=0,
        grid=(m_pad // tile_m,),
        in_specs=[
            pl.BlockSpec((tile_m, k_in), lambda i: (i, 0)),
            pl.BlockSpec((tile_m, 5), lambda i: (i, 0)),
            pl.BlockSpec((k_in, d_model), lambda i: (0, 0)),     # VMEM resident
            pl.BlockSpec((t_size, d_model), lambda i: (0, 0)),   # VMEM resident
        ],
        out_specs=pl.BlockSpec((tile_m, d_model), lambda i: (i, 0)),
    )
    out = pl.pallas_call(
        data_embedding_kernel,
        out_shape=jax.ShapeDtypeStruct((m_pad, d_model), jnp.float32),
        grid_spec=grid_spec,
        compiler_params=pltpu.CompilerParams(
            dimension_semantics=("parallel",),
            vmem_limit_bytes=32 * 1024 * 1024,
        ),
    )(a, gidx, w2d, table)
    return out[:M].reshape(B, L, d_model)


# --------------------------- parameter builders ------------------------------
def sinusoid_pos_table(n_position, d_model):
    # PositionalEmbedding._get_sinusoid_encoding_table
    pos = np.arange(n_position, dtype=np.float64)[:, None]
    j = np.arange(d_model)[None, :]
    angle = pos / np.power(10000.0, 2 * (j // 2) / d_model)
    table = np.zeros((n_position, d_model), dtype=np.float64)
    table[:, 0::2] = np.sin(angle[:, 0::2])
    table[:, 1::2] = np.cos(angle[:, 1::2])
    return jnp.asarray(table, dtype=jnp.float32)


def fixed_embedding_table(c_in, d_model):
    # FixedEmbedding.__init__ fixed sinusoid weight
    w = np.zeros((c_in, d_model), dtype=np.float64)
    position = np.arange(c_in, dtype=np.float64)[:, None]
    div_term = np.exp(np.arange(0, d_model, 2, dtype=np.float64)
                      * -(math.log(10000.0) / d_model))
    w[:, 0::2] = np.sin(position * div_term)
    w[:, 1::2] = np.cos(position * div_term)
    return jnp.asarray(w, dtype=jnp.float32)


def init_token_conv_weight(key, c_in, d_model):
    # nn.init.kaiming_normal_(fan_in, leaky_relu) on Conv1d(c_in, d_model, 3)
    gain = math.sqrt(2.0 / (1.0 + 0.01 ** 2))
    fan_in = c_in * 3
    std = gain / math.sqrt(fan_in)
    w_pt = jax.random.normal(key, (d_model, c_in, 3), dtype=jnp.float32) * std
    # rearrange PyTorch (out, in, k) -> (k, in, out) so each tap is a matmul
    return jnp.transpose(w_pt, (2, 1, 0))


# ------------------------------- reference -----------------------------------
def reference(x, x_mark, conv_w, temporal_tables, pos_table):
    B, L, _ = x.shape
    xm1 = jnp.roll(x, 1, axis=1)
    xp1 = jnp.roll(x, -1, axis=1)
    val = (jnp.einsum('blc,cd->bld', xm1, conv_w[0])
           + jnp.einsum('blc,cd->bld', x, conv_w[1])
           + jnp.einsum('blc,cd->bld', xp1, conv_w[2]))
    idx = x_mark.astype(jnp.int32)
    month_t, day_t, weekday_t, hour_t = temporal_tables
    temp = (hour_t[idx[..., 3]] + weekday_t[idx[..., 2]]
            + day_t[idx[..., 1]] + month_t[idx[..., 0]])
    return val + temp + pos_table[:L][None]


# --------------------------------- demo ---------------------------------------
def _run_case(key, B, L, c_in, d_model, block_rows):
    kx, kw, km = jax.random.split(key, 3)
    x = jax.random.normal(kx, (B, L, c_in), dtype=jnp.float32)
    km1, km2, km3, km4 = jax.random.split(km, 4)
    # x_mark columns: [month (0..12), day (0..31), weekday (0..6), hour (0..23)]
    x_mark = jnp.stack([
        jax.random.randint(km1, (B, L), 0, 13),
        jax.random.randint(km2, (B, L), 0, 32),
        jax.random.randint(km3, (B, L), 0, 7),
        jax.random.randint(km4, (B, L), 0, 24),
    ], axis=-1).astype(jnp.float32)

    conv_w = init_token_conv_weight(kw, c_in, d_model)
    temporal_tables = (
        fixed_embedding_table(13, d_model),   # month
        fixed_embedding_table(32, d_model),   # day
        fixed_embedding_table(7, d_model),    # weekday
        fixed_embedding_table(24, d_model),   # hour
    )
    pos_table = sinusoid_pos_table(1024, d_model)

    out = data_embedding(x, x_mark, conv_w, temporal_tables, pos_table,
                         block_rows=block_rows)
    out = jax.block_until_ready(out)

    ref = reference(x, x_mark, conv_w, temporal_tables, pos_table)
    assert out.shape == (B, L, d_model)
    assert jnp.allclose(out, ref, rtol=5e-5, atol=5e-5), \
        float(jnp.max(jnp.abs(out - ref)))


if __name__ == "__main__":
    key = jax.random.PRNGKey(0)
    k1, k2 = jax.random.split(key)
    # main case: lane-dense output (d_model multiple of 128), multi-step row grid
    _run_case(k1, B=4, L=96, c_in=7, d_model=128, block_rows=128)
    # small case: exercises row padding and d_model < 128 path
    _run_case(k2, B=2, L=50, c_in=3, d_model=32, block_rows=512)
    print("KERNEL_OK")
</pallas_src>

<mosaic_0001>
module attributes {stable_mosaic.version = 11 : i64} {
  func.func @data_embedding_kernel(%arg0: i32, %arg1: memref<128x21xf32, #tpu.memory_space<vmem>>, %arg2: memref<128x5xi32, #tpu.memory_space<vmem>>, %arg3: memref<21x128xf32, #tpu.memory_space<vmem>>, %arg4: memref<172x128xf32, #tpu.memory_space<vmem>>, %arg5: memref<128x128xf32, #tpu.memory_space<vmem>>) attributes {dimension_semantics = [#tpu.dimension_semantics<parallel>], iteration_bounds = array<i64: 3>, scalar_prefetch = 0 : i64, scratch_operands = 0 : i64, tpu.core_type = #tpu.core_type<tc>, window_params = [{transform_indices = @transform_0, window_bounds = array<i64: 128, 21>}, {transform_indices = @transform_1, window_bounds = array<i64: 128, 5>}, {pipeline_mode = #tpu.pipeline_mode<synchronous>, transform_indices = @transform_2, window_bounds = array<i64: 21, 128>}, {pipeline_mode = #tpu.pipeline_mode<synchronous>, transform_indices = @transform_3, window_bounds = array<i64: 172, 128>}, {transform_indices = @transform_4, window_bounds = array<i64: 128, 128>}]} {
    %c0 = arith.constant 0 : index
    %c0_0 = arith.constant 0 : index
    %0 = vector.load %arg1[%c0, %c0_0] : memref<128x21xf32, #tpu.memory_space<vmem>>, vector<128x21xf32>
    %c0_1 = arith.constant 0 : index
    %c0_2 = arith.constant 0 : index
    %1 = vector.load %arg3[%c0_1, %c0_2] : memref<21x128xf32, #tpu.memory_space<vmem>>, vector<21x128xf32>
    %cst = arith.constant dense<0.000000e+00> : vector<128x128xf32>
    %2 = tpu.matmul %0, %1, %cst {dimension_numbers = #tpu.dot_dimension_numbers<[1], [0], [0], [1], [0, 0, 1, 1], [], []>} : vector<128x21xf32>, vector<21x128xf32>, vector<128x128xf32> -> vector<128x128xf32>
    %c0_3 = arith.constant 0 : index
    %c0_4 = arith.constant 0 : index
    %3 = vector.load %arg2[%c0_3, %c0_4] : memref<128x5xi32, #tpu.memory_space<vmem>>, vector<128x5xi32>
    %4 = tpu.iota {dimensions = array<i32: 1>} : vector<128x172xi32>
    %5 = vector.extract_strided_slice %3 {offsets = [0, 0], sizes = [128, 1], strides = [1, 1]} : vector<128x5xi32> to vector<128x1xi32>
    %6 = vector.broadcast %5 : vector<128x1xi32> to vector<128x172xi32>
    %7 = arith.cmpi eq, %4, %6 : vector<128x172xi32>
    %8 = vector.extract_strided_slice %3 {offsets = [0, 1], sizes = [128, 1], strides = [1, 1]} : vector<128x5xi32> to vector<128x1xi32>
    %9 = vector.broadcast %8 : vector<128x1xi32> to vector<128x172xi32>
    %10 = arith.cmpi eq, %4, %9 : vector<128x172xi32>
    %11 = arith.ori %7, %10 : vector<128x172xi1>
    %12 = vector.extract_strided_slice %3 {offsets = [0, 2], sizes = [128, 1], strides = [1, 1]} : vector<128x5xi32> to vector<128x1xi32>
    %13 = vector.broadcast %12 : vector<128x1xi32> to vector<128x172xi32>
    %14 = arith.cmpi eq, %4, %13 : vector<128x172xi32>
    %15 = arith.ori %11, %14 : vector<128x172xi1>
    %16 = vector.extract_strided_slice %3 {offsets = [0, 3], sizes = [128, 1], strides = [1, 1]} : vector<128x5xi32> to vector<128x1xi32>
    %17 = vector.broadcast %16 : vector<128x1xi32> to vector<128x172xi32>
    %18 = arith.cmpi eq, %4, %17 : vector<128x172xi32>
    %19 = arith.ori %15, %18 : vector<128x172xi1>
    %20 = vector.extract_strided_slice %3 {offsets = [0, 4], sizes = [128, 1], strides = [1, 1]} : vector<128x5xi32> to vector<128x1xi32>
    %21 = vector.broadcast %20 : vector<128x1xi32> to vector<128x172xi32>
    %22 = arith.cmpi eq, %4, %21 : vector<128x172xi32>
    %23 = arith.ori %19, %22 : vector<128x172xi1>
    %24 = arith.extui %23 : vector<128x172xi1> to vector<128x172xi32>
    %25 = arith.sitofp %24 : vector<128x172xi32> to vector<128x172xf32>
    %c0_5 = arith.constant 0 : index
    %c0_6 = arith.constant 0 : index
    %26 = vector.load %arg4[%c0_5, %c0_6] : memref<172x128xf32, #tpu.memory_space<vmem>>, vector<172x128xf32>
    %cst_7 = arith.constant dense<0.000000e+00> : vector<128x128xf32>
    %27 = tpu.matmul %25, %26, %cst_7 {dimension_numbers = #tpu.dot_dimension_numbers<[1], [0], [0], [1], [0, 0, 1, 1], [], []>} : vector<128x172xf32>, vector<172x128xf32>, vector<128x128xf32> -> vector<128x128xf32>
    %28 = arith.addf %2, %27 : vector<128x128xf32>
    %c0_8 = arith.constant 0 : index
    %c0_9 = arith.constant 0 : index
    %29 = vector.load %arg5[%c0_8, %c0_9] : memref<128x128xf32, #tpu.memory_space<vmem>>, vector<128x128xf32>
    tpu.vector_store %arg5[%c0_8, %c0_9], %28 {strides = array<i32>} : memref<128x128xf32, #tpu.memory_space<vmem>>, vector<128x128xf32>,
    return
  }
  func.func @transform_0(%arg0: i32) -> (i32, i32) {
    %c0_i32 = arith.constant 0 : i32
    %c0_i32_0 = arith.constant 0 : i32
    return %arg0, %c0_i32 : i32, i32
  }
  func.func @transform_1(%arg0: i32) -> (i32, i32) {
    %c0_i32 = arith.constant 0 : i32
    %c0_i32_0 = arith.constant 0 : i32
    return %arg0, %c0_i32 : i32, i32
  }
  func.func @transform_2(%arg0: i32) -> (i32, i32) {
    %c0_i32 = arith.constant 0 : i32
    %c0_i32_0 = arith.constant 0 : i32
    %c0_i32_1 = arith.constant 0 : i32
    return %c0_i32, %c0_i32_0 : i32, i32
  }
  func.func @transform_3(%arg0: i32) -> (i32, i32) {
    %c0_i32 = arith.constant 0 : i32
    %c0_i32_0 = arith.constant 0 : i32
    %c0_i32_1 = arith.constant 0 : i32
    return %c0_i32, %c0_i32_0 : i32, i32
  }
  func.func @transform_4(%arg0: i32) -> (i32, i32) {
    %c0_i32 = arith.constant 0 : i32
    %c0_i32_0 = arith.constant 0 : i32
    return %arg0, %c0_i32 : i32, i32
  }
}

</mosaic_0001>

<llo_original>
// kernel: data_embedding.1
$region0: #{data_embedding.1}
  #allocation0 [shape = 'u32[]', space=smem, size = 0x4, offset = 0x4, fixed_abs, tag = 'smem constant byte address 0x4 - core index']
  #allocation1 [shape = 'u32[72,128]{1,0:T(1,128)}', space=vmem, size = 0x9000, scoped, tag = 'internal scratch']
  %s0 = inlined_call_operand.vmem [shape: f32[384,21], index: 0, kind: input, shape index: {}]
  %s1 = inlined_call_operand.vmem [shape: s32[384,5], index: 1, kind: input, shape index: {}]
  %s2 = inlined_call_operand.vmem [shape: f32[21,128], index: 2, kind: input, shape index: {}]
  %s3 = inlined_call_operand.vmem [shape: f32[172,128], index: 3, kind: input, shape index: {}]
  %s4 = inlined_call_operand.hbm [shape: f32[384,128], index: 4, kind: output, shape index: {}]
  %s5 = sld [smem:[#allocation0]]
  $region49: #{data_embedding.1} parent=0
    _
  %s7 = ssub.s32 1, %s5
  %s8 = scalar_select 0, %s7, %s5
  $region1: #{data_embedding.1} parent=0
    #allocation2 [shape = 'u8[131072]{0}', space=vmem, size = 0x20000, scoped, tag = 'output window, operand 0']
    #allocation3 [shape = 's32[2]{0}', space=sflag, size = 0x8, scoped, tag = 'scoped memory for data_embedding.1']
    %9 = vsyncpa [#allocation3], 0
    %s10 = scalar_lea.sflag [#allocation3], 1
    %11 = vsyncpa %s10, 0
    loop: start=0, step=1, limit=5
    $region2: #{data_embedding.1} parent=1 // loop_pre_header
      _
    $region3: #{data_embedding.1} parent=1 // loop_header
      %s13 = sphi 0, %s17
      %p14 = scmp.ge.s32.totalorder %s13, 5
      %s23 = sphi 0, %s25
      %s26 = sphi 0, %s23
      %s27 = sphi 0, %s26
      %s43 = sphi 0, %s27
      %s49 = sphi 0, %s51
      %s52 = sphi 0, %s49
      %s53 = sphi 0, %s52
      %s69 = sphi 0, %s53
      %s73 = sphi 0, %s73
      %s75 = sphi 0, %s73
      %s76 = sphi 0, %s75
      %s90 = sphi 0, %s76
      %s94 = sphi 0, %s94
      %s96 = sphi 0, %s94
      %s97 = sphi 0, %s96
      %s111 = sphi 0, %s97
      %s117 = sphi 0, %s119
      %s120 = sphi 0, %s117
      %s121 = sphi 0, %s120
      %s137 = sphi 0, %s121
    $region4: #{data_embedding.1} parent=1 // loop_header_branch
      %16 = sbr.rel (%p14) target = $region8
    $region5: #{data_embedding.1} parent=1 // loop_body
      %s18 = ssub.s32 %s13, 1
      %s19 = ssub.s32 %s13, 2
      %s20 = sadd.s32 %s13, 1
      %s21 = ssub.s32 %s13, %s20
      %p22 = scmp.eq.s32.totalorder %s21, 0
      %s24 = sadd.s32 %s23, 1
      %s25 = scalar_select %p22, %s23, %s24
      %p28 = pneg %p22
      %p29 = scmp.eq.s32.totalorder %s13, 2
      %p30 = por %p28, %p29
      %p31 = scmp.ne.s32.totalorder %s23, %s26
      %p32 = scmp.eq.s32.totalorder %s13, 0
      %p33 = por %p31, %p32
      %p34 = scmp.ne.s32.totalorder %s23, %s26
      %p35 = scmp.eq.s32.totalorder %s18, 2
      %p36 = por %p34, %p35
      %p37 = scmp.ne.s32.totalorder %s26, %s27
      %p38 = scmp.eq.s32.totalorder %s18, 0
      %p39 = por %p37, %p38
      %p40 = scmp.ne.s32.totalorder %s26, %s27
      %p41 = scmp.eq.s32.totalorder %s19, 2
      %p42 = por %p40, %p41
      %p44 = scmp.ne.s32.totalorder %s27, %s43
      %p45 = scmp.eq.s32.totalorder %s19, 0
      %p46 = por %p44, %p45
      %s47 = ssub.s32 %s13, %s20
      %p48 = scmp.eq.s32.totalorder %s47, 0
      %s50 = sadd.s32 %s49, 1
      %s51 = scalar_select %p48, %s49, %s50
      %p54 = pneg %p48
      %p55 = scmp.eq.s32.totalorder %s13, 2
      %p56 = por %p54, %p55
      %p57 = scmp.ne.s32.totalorder %s49, %s52
      %p58 = scmp.eq.s32.totalorder %s13, 0
      %p59 = por %p57, %p58
      %p60 = scmp.ne.s32.totalorder %s49, %s52
      %p61 = scmp.eq.s32.totalorder %s18, 2
      %p62 = por %p60, %p61
      %p63 = scmp.ne.s32.totalorder %s52, %s53
      %p64 = scmp.eq.s32.totalorder %s18, 0
      %p65 = por %p63, %p64
      %p66 = scmp.ne.s32.totalorder %s52, %s53
      %p67 = scmp.eq.s32.totalorder %s19, 2
      %p68 = por %p66, %p67
      %p70 = scmp.ne.s32.totalorder %s53, %s69
      %p71 = scmp.eq.s32.totalorder %s19, 0
      %p72 = por %p70, %p71
      %s74 = sadd.s32 %s73, 1
      %p77 = scmp.eq.s32.totalorder %s13, 2
      %p78 = scmp.ne.s32.totalorder %s73, %s75
      %p79 = scmp.eq.s32.totalorder %s13, 0
      %p80 = por %p78, %p79
      %p81 = scmp.ne.s32.totalorder %s73, %s75
      %p82 = scmp.eq.s32.totalorder %s18, 2
      %p83 = por %p81, %p82
      %p84 = scmp.ne.s32.totalorder %s75, %s76
      %p85 = scmp.eq.s32.totalorder %s18, 0
      %p86 = por %p84, %p85
      %p87 = scmp.ne.s32.totalorder %s75, %s76
      %p88 = scmp.eq.s32.totalorder %s19, 2
      %p89 = por %p87, %p88
      %p91 = scmp.ne.s32.totalorder %s76, %s90
      %p92 = scmp.eq.s32.totalorder %s19, 0
      %p93 = por %p91, %p92
      %s95 = sadd.s32 %s94, 1
      %p98 = scmp.eq.s32.totalorder %s13, 2
      %p99 = scmp.ne.s32.totalorder %s94, %s96
      %p100 = scmp.eq.s32.totalorder %s13, 0
      %p101 = por %p99, %p100
      %p102 = scmp.ne.s32.totalorder %s94, %s96
      %p103 = scmp.eq.s32.totalorder %s18, 2
      %p104 = por %p102, %p103
      %p105 = scmp.ne.s32.totalorder %s96, %s97
      %p106 = scmp.eq.s32.totalorder %s18, 0
      %p107 = por %p105, %p106
      %p108 = scmp.ne.s32.totalorder %s96, %s97
      %p109 = scmp.eq.s32.totalorder %s19, 2
      %p110 = por %p108, %p109
      %p112 = scmp.ne.s32.totalorder %s97, %s111
      %p113 = scmp.eq.s32.totalorder %s19, 0
      %p114 = por %p112, %p113
      %s115 = ssub.s32 %s13, %s20
      %p116 = scmp.eq.s32.totalorder %s115, 0
      %s118 = sadd.s32 %s117, 1
      %s119 = scalar_select %p116, %s117, %s118
      %p122 = pneg %p116
      %p123 = scmp.eq.s32.totalorder %s13, 2
      %p124 = por %p122, %p123
      %p125 = scmp.ne.s32.totalorder %s117, %s120
      %p126 = scmp.eq.s32.totalorder %s13, 0
      %p127 = por %p125, %p126
      %p128 = scmp.ne.s32.totalorder %s117, %s120
      %p129 = scmp.eq.s32.totalorder %s18, 2
      %p130 = por %p128, %p129
      %p131 = scmp.ne.s32.totalorder %s120, %s121
      %p132 = scmp.eq.s32.totalorder %s18, 0
      %p133 = por %p131, %p132
      %p134 = scmp.ne.s32.totalorder %s120, %s121
      %p135 = scmp.eq.s32.totalorder %s19, 2
      %p136 = por %p134, %p135
      %p138 = scmp.ne.s32.totalorder %s121, %s137
      %p139 = scmp.eq.s32.totalorder %s19, 0
      %p140 = por %p138, %p139
      %p141 = scmp.le.s32.totalorder 1, %s13
      %p142 = scmp.lt.s32.totalorder %s13, 4
      %p143 = pnand %p141, %p142
      %p144 = pneg %p143
      // Predicated region
      $region9: #{data_embedding.1} parent=5 // pred_check
        _
      $region10: #{data_embedding.1} parent=5 // pred_check_branch
        %146 = sbr.rel (%p143) target = $region12
      $region11: #{data_embedding.1} parent=5 // pred_region
        %s147 = ssub.s32 %s13, 1
        // Predicated region
        $region13: #{data_embedding.1} parent=11 // pred_check
          %p148 = pneg %p86
        $region14: #{data_embedding.1} parent=11 // pred_check_branch
          %150 = sbr.rel (%p148) target = $region16
        $region15: #{data_embedding.1} parent=11 // pred_region
          _
        $region16: #{data_embedding.1} parent=11 // pred_fallthru
          _
        // Predicated region
        $region17: #{data_embedding.1} parent=11 // pred_check
          %p151 = pneg %p107
        $region18: #{data_embedding.1} parent=11 // pred_check_branch
          %153 = sbr.rel (%p151) target = $region20
        $region19: #{data_embedding.1} parent=11 // pred_region
          _
        $region20: #{data_embedding.1} parent=11 // pred_fallthru
          _
      $region12: #{data_embedding.1} parent=5 // pred_fallthru
        _
      %p154 = scmp.lt.s32.totalorder %s13, 3
      // Predicated region
      $region21: #{data_embedding.1} parent=5 // pred_check
        %p155 = pneg %p154
      $region22: #{data_embedding.1} parent=5 // pred_check_branch
        %157 = sbr.rel (%p155) target = $region24
      $region23: #{data_embedding.1} parent=5 // pred_region
        // Predicated region
        $region25: #{data_embedding.1} parent=23 // pred_check
          %p158 = pneg %p33
        $region26: #{data_embedding.1} parent=23 // pred_check_branch
          %160 = sbr.rel (%p158) target = $region28
        $region27: #{data_embedding.1} parent=23 // pred_region
          %s161 = smul.u32 16, %s13
          %p162 = scmp.lt.s32.totalorder %s161, 47
          %s163 = scalar_select %p162, %s161, 47
          %s164 = smul.addr %s163, 8
          %s165 = scalar_lea.vmem %s0, %s164
          %s166 = smul.u32 16, %s13
        $region28: #{data_embedding.1} parent=23 // pred_fallthru
          _
        // Predicated region
        $region29: #{data_embedding.1} parent=23 // pred_check
          %p167 = pneg %p59
        $region30: #{data_embedding.1} parent=23 // pred_check_branch
          %169 = sbr.rel (%p167) target = $region32
        $region31: #{data_embedding.1} parent=23 // pred_region
          %s170 = smul.u32 16, %s13
          %p171 = scmp.lt.s32.totalorder %s170, 47
          %s172 = scalar_select %p171, %s170, 47
          %s173 = smul.addr %s172, 8
          %s174 = scalar_lea.vmem %s1, %s173
          %s175 = smul.u32 16, %s13
        $region32: #{data_embedding.1} parent=23 // pred_fallthru
          _
      $region24: #{data_embedding.1} parent=5 // pred_fallthru
        _
      %p176 = scmp.le.s32.totalorder 1, %s13
      %p177 = scmp.lt.s32.totalorder %s13, 4
      %p178 = pnand %p176, %p177
      %p179 = pneg %p178
      // Predicated region
      $region33: #{data_embedding.1} parent=5 // pred_check
        _
      $region34: #{data_embedding.1} parent=5 // pred_check_branch
        %181 = sbr.rel (%p178) target = $region36
      $region35: #{data_embedding.1} parent=5 // pred_region
        %s182 = ssub.s32 %s13, 1
        %s183 = smul.u32 16, %s18
        %p184 = scmp.lt.s32.totalorder %s183, 47
        %s185 = scalar_select %p184, %s183, 47
        %s186 = smul.addr %s185, 8
        %s187 = scalar_lea.vmem %s0, %s186
        %p188 = pneg %p39
        %p189 = pneg %p36
        %s190 = smul.u32 16, %s18
        %p191 = scmp.lt.s32.totalorder %s190, 47
        %s192 = scalar_select %p191, %s190, 47
        %s193 = smul.addr %s192, 8
        %s194 = scalar_lea.vmem %s1, %s193
        %p195 = pneg %p65
        %p196 = pneg %p62
        %p197 = pneg %p86
        %p198 = pneg %p83
        %p199 = pneg %p107
        %p200 = pneg %p104
        %p201 = pneg %p133
        %p202 = pneg %p130
        %s203 = sand.u32 %s120, 1
        %s204 = scalar_lea.sflag [#allocation3], %s203
        %s205 = sand.u32 %s120, 1
        %s206 = smul.addr %s205, 128
        %s207 = scalar_lea.vmem [#allocation2], %s206
        %s208 = smul.u32 16, %s18
        %p209 = scmp.lt.s32.totalorder %s208, 47
        %s210 = scalar_select %p209, %s208, 47
        %s211 = smul.addr %s210, 8
        %s212 = scalar_lea.vmem %s0, %s211
        %s213 = smul.u32 16, %s18
        %s214 = smul.u32 16, %s18
        %p215 = scmp.lt.s32.totalorder %s214, 47
        %s216 = scalar_select %p215, %s214, 47
        %s217 = smul.addr %s216, 8
        %s218 = scalar_lea.vmem %s1, %s217
        %s219 = smul.u32 16, %s18
        %s220 = smul.u32 16, %s18
        %v221 = vld [vmem:[%s212] sm:$0xff]
        %v222 = vld [vmem:[%s212 + $0x8] sm:$0xff]
        %v223 = vld [vmem:[%s212 + $0x10] sm:$0xff]
        %v224 = vld [vmem:[%s212 + $0x18] sm:$0xff]
        %v225 = vld [vmem:[%s212 + $0x20] sm:$0xff]
        %v226 = vld [vmem:[%s212 + $0x28] sm:$0xff]
        %v227 = vld [vmem:[%s212 + $0x30] sm:$0xff]
        %v228 = vld [vmem:[%s212 + $0x38] sm:$0xff]
        %v229 = vld [vmem:[%s212 + $0x40] sm:$0xff]
        %v230 = vld [vmem:[%s212 + $0x48] sm:$0xff]
        %v231 = vld [vmem:[%s212 + $0x50] sm:$0xff]
        %v232 = vld [vmem:[%s212 + $0x58] sm:$0xff]
        %v233 = vld [vmem:[%s212 + $0x60] sm:$0xff]
        %v234 = vld [vmem:[%s212 + $0x68] sm:$0xff]
        %v235 = vld [vmem:[%s212 + $0x70] sm:$0xff]
        %v236 = vld [vmem:[%s212 + $0x78] sm:$0xff]
        %v237 = vld [vmem:[%s2] sm:$0xff]
        %v238 = vld [vmem:[%s2 + $0x8] sm:$0xff]
        %v239 = vld [vmem:[%s2 + $0x10] sm:$0x1f]
        %v240 = vld [vmem:[%s218] sm:$0xff]
        %v241 = vld [vmem:[%s218 + $0x8] sm:$0xff]
        %v242 = vld [vmem:[%s218 + $0x10] sm:$0xff]
        %v243 = vld [vmem:[%s218 + $0x18] sm:$0xff]
        %v244 = vld [vmem:[%s218 + $0x20] sm:$0xff]
        %v245 = vld [vmem:[%s218 + $0x28] sm:$0xff]
        %v246 = vld [vmem:[%s218 + $0x30] sm:$0xff]
        %v247 = vld [vmem:[%s218 + $0x38] sm:$0xff]
        %v248 = vld [vmem:[%s218 + $0x40] sm:$0xff]
        %v249 = vld [vmem:[%s218 + $0x48] sm:$0xff]
        %v250 = vld [vmem:[%s218 + $0x50] sm:$0xff]
        %v251 = vld [vmem:[%s218 + $0x58] sm:$0xff]
        %v252 = vld [vmem:[%s218 + $0x60] sm:$0xff]
        %v253 = vld [vmem:[%s218 + $0x68] sm:$0xff]
        %v254 = vld [vmem:[%s218 + $0x70] sm:$0xff]
        %v255 = vld [vmem:[%s218 + $0x78] sm:$0xff]
        %v256 = vlaneseq
        %v257 = vand.u32 %v256, 127
        %v258 = vadd.s32 %v257, 128
        %259 = vset.pattern.permute.xlu0 0
        %260 = vperm.xlu0 %259, %v240
        %v261 = vpop.permute.xlu0 %260
        %262 = vset.pattern.permute.xlu0 0
        %263 = vperm.xlu0 %262, %v241
        %v264 = vpop.permute.xlu0 %263
        %265 = vset.pattern.permute.xlu0 0
        %266 = vperm.xlu0 %265, %v242
        %v267 = vpop.permute.xlu0 %266
        %268 = vset.pattern.permute.xlu0 0
        %269 = vperm.xlu0 %268, %v243
        %v270 = vpop.permute.xlu0 %269
        %271 = vset.pattern.permute.xlu0 0
        %272 = vperm.xlu0 %271, %v244
        %v273 = vpop.permute.xlu0 %272
        %274 = vset.pattern.permute.xlu0 0
        %275 = vperm.xlu0 %274, %v245
        %v276 = vpop.permute.xlu0 %275
        %277 = vset.pattern.permute.xlu0 0
        %278 = vperm.xlu0 %277, %v246
        %v279 = vpop.permute.xlu0 %278
        %280 = vset.pattern.permute.xlu0 0
        %281 = vperm.xlu0 %280, %v247
        %v282 = vpop.permute.xlu0 %281
        %283 = vset.pattern.permute.xlu0 0
        %284 = vperm.xlu0 %283, %v248
        %v285 = vpop.permute.xlu0 %284
        %286 = vset.pattern.permute.xlu0 0
        %287 = vperm.xlu0 %286, %v249
        %v288 = vpop.permute.xlu0 %287
        %289 = vset.pattern.permute.xlu0 0
        %290 = vperm.xlu0 %289, %v250
        %v291 = vpop.permute.xlu0 %290
        %292 = vset.pattern.permute.xlu0 0
        %293 = vperm.xlu0 %292, %v251
        %v294 = vpop.permute.xlu0 %293
        %295 = vset.pattern.permute.xlu0 0
        %296 = vperm.xlu0 %295, %v252
        %v297 = vpop.permute.xlu0 %296
        %298 = vset.pattern.permute.xlu0 0
        %299 = vperm.xlu0 %298, %v253
        %v300 = vpop.permute.xlu0 %299
        %301 = vset.pattern.permute.xlu0 0
        %302 = vperm.xlu0 %301, %v254
        %v303 = vpop.permute.xlu0 %302
        %304 = vset.pattern.permute.xlu0 0
        %305 = vperm.xlu0 %304, %v255
        %v306 = vpop.permute.xlu0 %305
        %vm307 = vcmp.eq.s32.totalorder %v257, %v261
        %vm308 = vcmp.eq.s32.totalorder %v258, %v261
        %vm309 = vcmp.eq.s32.totalorder %v257, %v264
        %vm310 = vcmp.eq.s32.totalorder %v258, %v264
        %vm311 = vcmp.eq.s32.totalorder %v257, %v267
        %vm312 = vcmp.eq.s32.totalorder %v258, %v267
        %vm313 = vcmp.eq.s32.totalorder %v257, %v270
        %vm314 = vcmp.eq.s32.totalorder %v258, %v270
        %vm315 = vcmp.eq.s32.totalorder %v257, %v273
        %vm316 = vcmp.eq.s32.totalorder %v258, %v273
        %vm317 = vcmp.eq.s32.totalorder %v257, %v276
        %vm318 = vcmp.eq.s32.totalorder %v258, %v276
        %vm319 = vcmp.eq.s32.totalorder %v257, %v279
        %vm320 = vcmp.eq.s32.totalorder %v258, %v279
        %vm321 = vcmp.eq.s32.totalorder %v257, %v282
        %vm322 = vcmp.eq.s32.totalorder %v258, %v282
        %vm323 = vcmp.eq.s32.totalorder %v257, %v285
        %vm324 = vcmp.eq.s32.totalorder %v258, %v285
        %vm325 = vcmp.eq.s32.totalorder %v257, %v288
        %vm326 = vcmp.eq.s32.totalorder %v258, %v288
        %vm327 = vcmp.eq.s32.totalorder %v257, %v291
        %vm328 = vcmp.eq.s32.totalorder %v258, %v291
        %vm329 = vcmp.eq.s32.totalorder %v257, %v294
        %vm330 = vcmp.eq.s32.totalorder %v258, %v294
        %vm331 = vcmp.eq.s32.totalorder %v257, %v297
        %vm332 = vcmp.eq.s32.totalorder %v258, %v297
        %vm333 = vcmp.eq.s32.totalorder %v257, %v300
        %vm334 = vcmp.eq.s32.totalorder %v258, %v300
        %vm335 = vcmp.eq.s32.totalorder %v257, %v303
        %vm336 = vcmp.eq.s32.totalorder %v258, %v303
        %vm337 = vcmp.eq.s32.totalorder %v257, %v306
        %vm338 = vcmp.eq.s32.totalorder %v258, %v306
        %339 = vset.pattern.permute.xlu0 1
        %340 = vperm.xlu0 %339, %v240
        %v341 = vpop.permute.xlu0 %340
        %342 = vset.pattern.permute.xlu0 1
        %343 = vperm.xlu0 %342, %v241
        %v344 = vpop.permute.xlu0 %343
        %345 = vset.pattern.permute.xlu0 1
        %346 = vperm.xlu0 %345, %v242
        %v347 = vpop.permute.xlu0 %346
        %348 = vset.pattern.permute.xlu0 1
        %349 = vperm.xlu0 %348, %v243
        %v350 = vpop.permute.xlu0 %349
        %351 = vset.pattern.permute.xlu0 1
        %352 = vperm.xlu0 %351, %v244
        %v353 = vpop.permute.xlu0 %352
        %354 = vset.pattern.permute.xlu0 1
        %355 = vperm.xlu0 %354, %v245
        %v356 = vpop.permute.xlu0 %355
        %357 = vset.pattern.permute.xlu0 1
        %358 = vperm.xlu0 %357, %v246
        %v359 = vpop.permute.xlu0 %358
        %360 = vset.pattern.permute.xlu0 1
        %361 = vperm.xlu0 %360, %v247
        %v362 = vpop.permute.xlu0 %361
        %363 = vset.pattern.permute.xlu0 1
        %364 = vperm.xlu0 %363, %v248
        %v365 = vpop.permute.xlu0 %364
        %366 = vset.pattern.permute.xlu0 1
        %367 = vperm.xlu0 %366, %v249
        %v368 = vpop.permute.xlu0 %367
        %369 = vset.pattern.permute.xlu0 1
        %370 = vperm.xlu0 %369, %v250
        %v371 = vpop.permute.xlu0 %370
        %372 = vset.pattern.permute.xlu0 1
        %373 = vperm.xlu0 %372, %v251
        %v374 = vpop.permute.xlu0 %373
        %375 = vset.pattern.permute.xlu0 1
        %376 = vperm.xlu0 %375, %v252
        %v377 = vpop.permute.xlu0 %376
        %378 = vset.pattern.permute.xlu0 1
        %379 = vperm.xlu0 %378, %v253
        %v380 = vpop.permute.xlu0 %379
        %381 = vset.pattern.permute.xlu0 1
        %382 = vperm.xlu0 %381, %v254
        %v383 = vpop.permute.xlu0 %382
        %384 = vset.pattern.permute.xlu0 1
        %385 = vperm.xlu0 %384, %v255
        %v386 = vpop.permute.xlu0 %385
        %vm387 = vcmp.eq.s32.totalorder %v257, %v341
        %vm388 = vcmp.eq.s32.totalorder %v258, %v341
        %vm389 = vcmp.eq.s32.totalorder %v257, %v344
        %vm390 = vcmp.eq.s32.totalorder %v258, %v344
        %vm391 = vcmp.eq.s32.totalorder %v257, %v347
        %vm392 = vcmp.eq.s32.totalorder %v258, %v347
        %vm393 = vcmp.eq.s32.totalorder %v257, %v350
        %vm394 = vcmp.eq.s32.totalorder %v258, %v350
        %vm395 = vcmp.eq.s32.totalorder %v257, %v353
        %vm396 = vcmp.eq.s32.totalorder %v258, %v353
        %vm397 = vcmp.eq.s32.totalorder %v257, %v356
        %vm398 = vcmp.eq.s32.totalorder %v258, %v356
        %vm399 = vcmp.eq.s32.totalorder %v257, %v359
        %vm400 = vcmp.eq.s32.totalorder %v258, %v359
        %vm401 = vcmp.eq.s32.totalorder %v257, %v362
        %vm402 = vcmp.eq.s32.totalorder %v258, %v362
        %vm403 = vcmp.eq.s32.totalorder %v257, %v365
        %vm404 = vcmp.eq.s32.totalorder %v258, %v365
        %vm405 = vcmp.eq.s32.totalorder %v257, %v368
        %vm406 = vcmp.eq.s32.totalorder %v258, %v368
        %vm407 = vcmp.eq.s32.totalorder %v257, %v371
        %vm408 = vcmp.eq.s32.totalorder %v258, %v371
        %vm409 = vcmp.eq.s32.totalorder %v257, %v374
        %vm410 = vcmp.eq.s32.totalorder %v258, %v374
        %vm411 = vcmp.eq.s32.totalorder %v257, %v377
        %vm412 = vcmp.eq.s32.totalorder %v258, %v377
        %vm413 = vcmp.eq.s32.totalorder %v257, %v380
        %vm414 = vcmp.eq.s32.totalorder %v258, %v380
        %vm415 = vcmp.eq.s32.totalorder %v257, %v383
        %vm416 = vcmp.eq.s32.totalorder %v258, %v383
        %vm417 = vcmp.eq.s32.totalorder %v257, %v386
        %vm418 = vcmp.eq.s32.totalorder %v258, %v386
        %vm419 = vmor %vm307, %vm387
        %vm420 = vmor %vm308, %vm388
        %vm421 = vmor %vm309, %vm389
        %vm422 = vmor %vm310, %vm390
        %vm423 = vmor %vm311, %vm391
        %vm424 = vmor %vm312, %vm392
        %vm425 = vmor %vm313, %vm393
        %vm426 = vmor %vm314, %vm394
        %vm427 = vmor %vm315, %vm395
        %vm428 = vmor %vm316, %vm396
        %vm429 = vmor %vm317, %vm397
        %vm430 = vmor %vm318, %vm398
        %vm431 = vmor %vm319, %vm399
        %vm432 = vmor %vm320, %vm400
        %vm433 = vmor %vm321, %vm401
        %vm434 = vmor %vm322, %vm402
        %vm435 = vmor %vm323, %vm403
        %vm436 = vmor %vm324, %vm404
        %vm437 = vmor %vm325, %vm405
        %vm438 = vmor %vm326, %vm406
        %vm439 = vmor %vm327, %vm407
        %vm440 = vmor %vm328, %vm408
        %vm441 = vmor %vm329, %vm409
        %vm442 = vmor %vm330, %vm410
        %vm443 = vmor %vm331, %vm411
        %vm444 = vmor %vm332, %vm412
        %vm445 = vmor %vm333, %vm413
        %vm446 = vmor %vm334, %vm414
        %vm447 = vmor %vm335, %vm415
        %vm448 = vmor %vm336, %vm416
        %vm449 = vmor %vm337, %vm417
        %vm450 = vmor %vm338, %vm418
        %451 = vset.pattern.permute.xlu0 2
        %452 = vperm.xlu0 %451, %v240
        %v453 = vpop.permute.xlu0 %452
        %454 = vset.pattern.permute.xlu0 2
        %455 = vperm.xlu0 %454, %v241
        %v456 = vpop.permute.xlu0 %455
        %457 = vset.pattern.permute.xlu0 2
        %458 = vperm.xlu0 %457, %v242
        %v459 = vpop.permute.xlu0 %458
        %460 = vset.pattern.permute.xlu0 2
        %461 = vperm.xlu0 %460, %v243
        %v462 = vpop.permute.xlu0 %461
        %463 = vset.pattern.permute.xlu0 2
        %464 = vperm.xlu0 %463, %v244
        %v465 = vpop.permute.xlu0 %464
        %466 = vset.pattern.permute.xlu0 2
        %467 = vperm.xlu0 %466, %v245
        %v468 = vpop.permute.xlu0 %467
        %469 = vset.pattern.permute.xlu0 2
        %470 = vperm.xlu0 %469, %v246
        %v471 = vpop.permute.xlu0 %470
        %472 = vset.pattern.permute.xlu0 2
        %473 = vperm.xlu0 %472, %v247
        %v474 = vpop.permute.xlu0 %473
        %475 = vset.pattern.permute.xlu0 2
        %476 = vperm.xlu0 %475, %v248
        %v477 = vpop.permute.xlu0 %476
        %478 = vset.pattern.permute.xlu0 2
        %479 = vperm.xlu0 %478, %v249
        %v480 = vpop.permute.xlu0 %479
        %481 = vset.pattern.permute.xlu0 2
        %482 = vperm.xlu0 %481, %v250
        %v483 = vpop.permute.xlu0 %482
        %484 = vset.pattern.permute.xlu0 2
        %485 = vperm.xlu0 %484, %v251
        %v486 = vpop.permute.xlu0 %485
        %487 = vset.pattern.permute.xlu0 2
        %488 = vperm.xlu0 %487, %v252
        %v489 = vpop.permute.xlu0 %488
        %490 = vset.pattern.permute.xlu0 2
        %491 = vperm.xlu0 %490, %v253
        %v492 = vpop.permute.xlu0 %491
        %493 = vset.pattern.permute.xlu0 2
        %494 = vperm.xlu0 %493, %v254
        %v495 = vpop.permute.xlu0 %494
        %496 = vset.pattern.permute.xlu0 2
        %497 = vperm.xlu0 %496, %v255
        %v498 = vpop.permute.xlu0 %497
        %vm499 = vcmp.eq.s32.totalorder %v257, %v453
        %vm500 = vcmp.eq.s32.totalorder %v258, %v453
        %vm501 = vcmp.eq.s32.totalorder %v257, %v456
        %vm502 = vcmp.eq.s32.totalorder %v258, %v456
        %vm503 = vcmp.eq.s32.totalorder %v257, %v459
        %vm504 = vcmp.eq.s32.totalorder %v258, %v459
        %vm505 = vcmp.eq.s32.totalorder %v257, %v462
        %vm506 = vcmp.eq.s32.totalorder %v258, %v462
        %vm507 = vcmp.eq.s32.totalorder %v257, %v465
        %vm508 = vcmp.eq.s32.totalorder %v258, %v465
        %vm509 = vcmp.eq.s32.totalorder %v257, %v468
        %vm510 = vcmp.eq.s32.totalorder %v258, %v468
        %vm511 = vcmp.eq.s32.totalorder %v257, %v471
        %vm512 = vcmp.eq.s32.totalorder %v258, %v471
        %vm513 = vcmp.eq.s32.totalorder %v257, %v474
        %vm514 = vcmp.eq.s32.totalorder %v258, %v474
        %vm515 = vcmp.eq.s32.totalorder %v257, %v477
        %vm516 = vcmp.eq.s32.totalorder %v258, %v477
        %vm517 = vcmp.eq.s32.totalorder %v257, %v480
        %vm518 = vcmp.eq.s32.totalorder %v258, %v480
        %vm519 = vcmp.eq.s32.totalorder %v257, %v483
        %vm520 = vcmp.eq.s32.totalorder %v258, %v483
        %vm521 = vcmp.eq.s32.totalorder %v257, %v486
        %vm522 = vcmp.eq.s32.totalorder %v258, %v486
        %vm523 = vcmp.eq.s32.totalorder %v257, %v489
        %vm524 = vcmp.eq.s32.totalorder %v258, %v489
        %vm525 = vcmp.eq.s32.totalorder %v257, %v492
        %vm526 = vcmp.eq.s32.totalorder %v258, %v492
        %vm527 = vcmp.eq.s32.totalorder %v257, %v495
        %vm528 = vcmp.eq.s32.totalorder %v258, %v495
        %vm529 = vcmp.eq.s32.totalorder %v257, %v498
        %vm530 = vcmp.eq.s32.totalorder %v258, %v498
        %vm531 = vmor %vm419, %vm499
        %vm532 = vmor %vm420, %vm500
        %vm533 = vmor %vm421, %vm501
        %vm534 = vmor %vm422, %vm502
        %vm535 = vmor %vm423, %vm503
        %vm536 = vmor %vm424, %vm504
        %vm537 = vmor %vm425, %vm505
        %vm538 = vmor %vm426, %vm506
        %vm539 = vmor %vm427, %vm507
        %vm540 = vmor %vm428, %vm508
        %vm541 = vmor %vm429, %vm509
        %vm542 = vmor %vm430, %vm510
        %vm543 = vmor %vm431, %vm511
        %vm544 = vmor %vm432, %vm512
        %vm545 = vmor %vm433, %vm513
        %vm546 = vmor %vm434, %vm514
        %vm547 = vmor %vm435, %vm515
        %vm548 = vmor %vm436, %vm516
        %vm549 = vmor %vm437, %vm517
        %vm550 = vmor %vm438, %vm518
        %vm551 = vmor %vm439, %vm519
        %vm552 = vmor %vm440, %vm520
        %vm553 = vmor %vm441, %vm521
        %vm554 = vmor %vm442, %vm522
        %vm555 = vmor %vm443, %vm523
        %vm556 = vmor %vm444, %vm524
        %vm557 = vmor %vm445, %vm525
        %vm558 = vmor %vm446, %vm526
        %vm559 = vmor %vm447, %vm527
        %vm560 = vmor %vm448, %vm528
        %vm561 = vmor %vm449, %vm529
        %vm562 = vmor %vm450, %vm530
        %563 = vset.pattern.permute.xlu0 3
        %564 = vperm.xlu0 %563, %v240
        %v565 = vpop.permute.xlu0 %564
        %566 = vset.pattern.permute.xlu0 3
        %567 = vperm.xlu0 %566, %v241
        %v568 = vpop.permute.xlu0 %567
        %569 = vset.pattern.permute.xlu0 3
        %570 = vperm.xlu0 %569, %v242
        %v571 = vpop.permute.xlu0 %570
        %572 = vset.pattern.permute.xlu0 3
        %573 = vperm.xlu0 %572, %v243
        %v574 = vpop.permute.xlu0 %573
        %575 = vset.pattern.permute.xlu0 3
        %576 = vperm.xlu0 %575, %v244
        %v577 = vpop.permute.xlu0 %576
        %578 = vset.pattern.permute.xlu0 3
        %579 = vperm.xlu0 %578, %v245
        %v580 = vpop.permute.xlu0 %579
        %581 = vset.pattern.permute.xlu0 3
        %582 = vperm.xlu0 %581, %v246
        %v583 = vpop.permute.xlu0 %582
        %584 = vset.pattern.permute.xlu0 3
        %585 = vperm.xlu0 %584, %v247
        %v586 = vpop.permute.xlu0 %585
        %587 = vset.pattern.permute.xlu0 3
        %588 = vperm.xlu0 %587, %v248
        %v589 = vpop.permute.xlu0 %588
        %590 = vset.pattern.permute.xlu0 3
        %591 = vperm.xlu0 %590, %v249
        %v592 = vpop.permute.xlu0 %591
        %593 = vset.pattern.permute.xlu0 3
        %594 = vperm.xlu0 %593, %v250
        %v595 = vpop.permute.xlu0 %594
        %596 = vset.pattern.permute.xlu0 3
        %597 = vperm.xlu0 %596, %v251
        %v598 = vpop.permute.xlu0 %597
        %599 = vset.pattern.permute.xlu0 3
        %600 = vperm.xlu0 %599, %v252
        %v601 = vpop.permute.xlu0 %600
        %602 = vset.pattern.permute.xlu0 3
        %603 = vperm.xlu0 %602, %v253
        %v604 = vpop.permute.xlu0 %603
        %605 = vset.pattern.permute.xlu0 3
        %606 = vperm.xlu0 %605, %v254
        %v607 = vpop.permute.xlu0 %606
        %608 = vset.pattern.permute.xlu0 3
        %609 = vperm.xlu0 %608, %v255
        %v610 = vpop.permute.xlu0 %609
        %vm611 = vcmp.eq.s32.totalorder %v257, %v565
        %vm612 = vcmp.eq.s32.totalorder %v258, %v565
        %vm613 = vcmp.eq.s32.totalorder %v257, %v568
        %vm614 = vcmp.eq.s32.totalorder %v258, %v568
        %vm615 = vcmp.eq.s32.totalorder %v257, %v571
        %vm616 = vcmp.eq.s32.totalorder %v258, %v571
        %vm617 = vcmp.eq.s32.totalorder %v257, %v574
        %vm618 = vcmp.eq.s32.totalorder %v258, %v574
        %vm619 = vcmp.eq.s32.totalorder %v257, %v577
        %vm620 = vcmp.eq.s32.totalorder %v258, %v577
        %vm621 = vcmp.eq.s32.totalorder %v257, %v580
        %vm622 = vcmp.eq.s32.totalorder %v258, %v580
        %vm623 = vcmp.eq.s32.totalorder %v257, %v583
        %vm624 = vcmp.eq.s32.totalorder %v258, %v583
        %vm625 = vcmp.eq.s32.totalorder %v257, %v586
        %vm626 = vcmp.eq.s32.totalorder %v258, %v586
        %vm627 = vcmp.eq.s32.totalorder %v257, %v589
        %vm628 = vcmp.eq.s32.totalorder %v258, %v589
        %vm629 = vcmp.eq.s32.totalorder %v257, %v592
        %vm630 = vcmp.eq.s32.totalorder %v258, %v592
        %vm631 = vcmp.eq.s32.totalorder %v257, %v595
        %vm632 = vcmp.eq.s32.totalorder %v258, %v595
        %vm633 = vcmp.eq.s32.totalorder %v257, %v598
        %vm634 = vcmp.eq.s32.totalorder %v258, %v598
        %vm635 = vcmp.eq.s32.totalorder %v257, %v601
        %vm636 = vcmp.eq.s32.totalorder %v258, %v601
        %vm637 = vcmp.eq.s32.totalorder %v257, %v604
        %vm638 = vcmp.eq.s32.totalorder %v258, %v604
        %vm639 = vcmp.eq.s32.totalorder %v257, %v607
        %vm640 = vcmp.eq.s32.totalorder %v258, %v607
        %vm641 = vcmp.eq.s32.totalorder %v257, %v610
        %vm642 = vcmp.eq.s32.totalorder %v258, %v610
        %vm643 = vmor %vm531, %vm611
        %vm644 = vmor %vm532, %vm612
        %vm645 = vmor %vm533, %vm613
        %vm646 = vmor %vm534, %vm614
        %vm647 = vmor %vm535, %vm615
        %vm648 = vmor %vm536, %vm616
        %vm649 = vmor %vm537, %vm617
        %vm650 = vmor %vm538, %vm618
        %vm651 = vmor %vm539, %vm619
        %vm652 = vmor %vm540, %vm620
        %vm653 = vmor %vm541, %vm621
        %vm654 = vmor %vm542, %vm622
        %vm655 = vmor %vm543, %vm623
        %vm656 = vmor %vm544, %vm624
        %vm657 = vmor %vm545, %vm625
        %vm658 = vmor %vm546, %vm626
        %vm659 = vmor %vm547, %vm627
        %vm660 = vmor %vm548, %vm628
        %vm661 = vmor %vm549, %vm629
        %vm662 = vmor %vm550, %vm630
        %vm663 = vmor %vm551, %vm631
        %vm664 = vmor %vm552, %vm632
        %vm665 = vmor %vm553, %vm633
        %vm666 = vmor %vm554, %vm634
        %vm667 = vmor %vm555, %vm635
        %vm668 = vmor %vm556, %vm636
        %vm669 = vmor %vm557, %vm637
        %vm670 = vmor %vm558, %vm638
        %vm671 = vmor %vm559, %vm639
        %vm672 = vmor %vm560, %vm640
        %vm673 = vmor %vm561, %vm641
        %vm674 = vmor %vm562, %vm642
        %675 = vset.pattern.permute.xlu0 4
        %676 = vperm.xlu0 %675, %v240
        %v677 = vpop.permute.xlu0 %676
        %678 = vset.pattern.permute.xlu0 4
        %679 = vperm.xlu0 %678, %v241
        %v680 = vpop.permute.xlu0 %679
        %681 = vset.pattern.permute.xlu0 4
        %682 = vperm.xlu0 %681, %v242
        %v683 = vpop.permute.xlu0 %682
        %684 = vset.pattern.permute.xlu0 4
        %685 = vperm.xlu0 %684, %v243
        %v686 = vpop.permute.xlu0 %685
        %687 = vset.pattern.permute.xlu0 4
        %688 = vperm.xlu0 %687, %v244
        %v689 = vpop.permute.xlu0 %688
        %690 = vset.pattern.permute.xlu0 4
        %691 = vperm.xlu0 %690, %v245
        %v692 = vpop.permute.xlu0 %691
        %693 = vset.pattern.permute.xlu0 4
        %694 = vperm.xlu0 %693, %v246
        %v695 = vpop.permute.xlu0 %694
        %696 = vset.pattern.permute.xlu0 4
        %697 = vperm.xlu0 %696, %v247
        %v698 = vpop.permute.xlu0 %697
        %699 = vset.pattern.permute.xlu0 4
        %700 = vperm.xlu0 %699, %v248
        %v701 = vpop.permute.xlu0 %700
        %702 = vset.pattern.permute.xlu0 4
        %703 = vperm.xlu0 %702, %v249
        %v704 = vpop.permute.xlu0 %703
        %705 = vset.pattern.permute.xlu0 4
        %706 = vperm.xlu0 %705, %v250
        %v707 = vpop.permute.xlu0 %706
        %708 = vset.pattern.permute.xlu0 4
        %709 = vperm.xlu0 %708, %v251
        %v710 = vpop.permute.xlu0 %709
        %711 = vset.pattern.permute.xlu0 4
        %712 = vperm.xlu0 %711, %v252
        %v713 = vpop.permute.xlu0 %712
        %714 = vset.pattern.permute.xlu0 4
        %715 = vperm.xlu0 %714, %v253
        %v716 = vpop.permute.xlu0 %715
        %717 = vset.pattern.permute.xlu0 4
        %718 = vperm.xlu0 %717, %v254
        %v719 = vpop.permute.xlu0 %718
        %720 = vset.pattern.permute.xlu0 4
        %721 = vperm.xlu0 %720, %v255
        %v722 = vpop.permute.xlu0 %721
        %vm723 = vcmp.eq.s32.totalorder %v257, %v677
        %vm724 = vcmp.eq.s32.totalorder %v258, %v677
        %vm725 = vcmp.eq.s32.totalorder %v257, %v680
        %vm726 = vcmp.eq.s32.totalorder %v258, %v680
        %vm727 = vcmp.eq.s32.totalorder %v257, %v683
        %vm728 = vcmp.eq.s32.totalorder %v258, %v683
        %vm729 = vcmp.eq.s32.totalorder %v257, %v686
        %vm730 = vcmp.eq.s32.totalorder %v258, %v686
        %vm731 = vcmp.eq.s32.totalorder %v257, %v689
        %vm732 = vcmp.eq.s32.totalorder %v258, %v689
        %vm733 = vcmp.eq.s32.totalorder %v257, %v692
        %vm734 = vcmp.eq.s32.totalorder %v258, %v692
        %vm735 = vcmp.eq.s32.totalorder %v257, %v695
        %vm736 = vcmp.eq.s32.totalorder %v258, %v695
        %vm737 = vcmp.eq.s32.totalorder %v257, %v698
        %vm738 = vcmp.eq.s32.totalorder %v258, %v698
        %vm739 = vcmp.eq.s32.totalorder %v257, %v701
        %vm740 = vcmp.eq.s32.totalorder %v258, %v701
        %vm741 = vcmp.eq.s32.totalorder %v257, %v704
        %vm742 = vcmp.eq.s32.totalorder %v258, %v704
        %vm743 = vcmp.eq.s32.totalorder %v257, %v707
        %vm744 = vcmp.eq.s32.totalorder %v258, %v707
        %vm745 = vcmp.eq.s32.totalorder %v257, %v710
        %vm746 = vcmp.eq.s32.totalorder %v258, %v710
        %vm747 = vcmp.eq.s32.totalorder %v257, %v713
        %vm748 = vcmp.eq.s32.totalorder %v258, %v713
        %vm749 = vcmp.eq.s32.totalorder %v257, %v716
        %vm750 = vcmp.eq.s32.totalorder %v258, %v716
        %vm751 = vcmp.eq.s32.totalorder %v257, %v719
        %vm752 = vcmp.eq.s32.totalorder %v258, %v719
        %vm753 = vcmp.eq.s32.totalorder %v257, %v722
        %vm754 = vcmp.eq.s32.totalorder %v258, %v722
        %vm755 = vmor %vm643, %vm723
        %vm756 = vmor %vm644, %vm724
        %vm757 = vmor %vm645, %vm725
        %vm758 = vmor %vm646, %vm726
        %vm759 = vmor %vm647, %vm727
        %vm760 = vmor %vm648, %vm728
        %vm761 = vmor %vm649, %vm729
        %vm762 = vmor %vm650, %vm730
        %vm763 = vmor %vm651, %vm731
        %vm764 = vmor %vm652, %vm732
        %vm765 = vmor %vm653, %vm733
        %vm766 = vmor %vm654, %vm734
        %vm767 = vmor %vm655, %vm735
        %vm768 = vmor %vm656, %vm736
        %vm769 = vmor %vm657, %vm737
        %vm770 = vmor %vm658, %vm738
        %vm771 = vmor %vm659, %vm739
        %vm772 = vmor %vm660, %vm740
        %vm773 = vmor %vm661, %vm741
        %vm774 = vmor %vm662, %vm742
        %vm775 = vmor %vm663, %vm743
        %vm776 = vmor %vm664, %vm744
        %vm777 = vmor %vm665, %vm745
        %vm778 = vmor %vm666, %vm746
        %vm779 = vmor %vm667, %vm747
        %vm780 = vmor %vm668, %vm748
        %vm781 = vmor %vm669, %vm749
        %vm782 = vmor %vm670, %vm750
        %vm783 = vmor %vm671, %vm751
        %vm784 = vmor %vm672, %vm752
        %vm785 = vmor %vm673, %vm753
        %vm786 = vmor %vm674, %vm754
        %v787 = vsel %vm755, 1, 0
        %v788 = vsel %vm756, 1, 0
        %v789 = vsel %vm757, 1, 0
        %v790 = vsel %vm758, 1, 0
        %v791 = vsel %vm759, 1, 0
        %v792 = vsel %vm760, 1, 0
        %v793 = vsel %vm761, 1, 0
        %v794 = vsel %vm762, 1, 0
        %v795 = vsel %vm763, 1, 0
        %v796 = vsel %vm764, 1, 0
        %v797 = vsel %vm765, 1, 0
        %v798 = vsel %vm766, 1, 0
        %v799 = vsel %vm767, 1, 0
        %v800 = vsel %vm768, 1, 0
        %v801 = vsel %vm769, 1, 0
        %v802 = vsel %vm770, 1, 0
        %v803 = vsel %vm771, 1, 0
        %v804 = vsel %vm772, 1, 0
        %v805 = vsel %vm773, 1, 0
        %v806 = vsel %vm774, 1, 0
        %v807 = vsel %vm775, 1, 0
        %v808 = vsel %vm776, 1, 0
        %v809 = vsel %vm777, 1, 0
        %v810 = vsel %vm778, 1, 0
        %v811 = vsel %vm779, 1, 0
        %v812 = vsel %vm780, 1, 0
        %v813 = vsel %vm781, 1, 0
        %v814 = vsel %vm782, 1, 0
        %v815 = vsel %vm783, 1, 0
        %v816 = vsel %vm784, 1, 0
        %v817 = vsel %vm785, 1, 0
        %v818 = vsel %vm786, 1, 0
        %v819 = vcvt.s32.f32 %v787
        %v820 = vcvt.s32.f32 %v788
        %v821 = vcvt.s32.f32 %v789
        %v822 = vcvt.s32.f32 %v790
        %v823 = vcvt.s32.f32 %v791
        %v824 = vcvt.s32.f32 %v792
        %v825 = vcvt.s32.f32 %v793
        %v826 = vcvt.s32.f32 %v794
        %v827 = vcvt.s32.f32 %v795
        %v828 = vcvt.s32.f32 %v796
        %v829 = vcvt.s32.f32 %v797
        %v830 = vcvt.s32.f32 %v798
        %v831 = vcvt.s32.f32 %v799
        %v832 = vcvt.s32.f32 %v800
        %v833 = vcvt.s32.f32 %v801
        %v834 = vcvt.s32.f32 %v802
        %v835 = vcvt.s32.f32 %v803
        %v836 = vcvt.s32.f32 %v804
        %v837 = vcvt.s32.f32 %v805
        %v838 = vcvt.s32.f32 %v806
        %v839 = vcvt.s32.f32 %v807
        %v840 = vcvt.s32.f32 %v808
        %v841 = vcvt.s32.f32 %v809
        %v842 = vcvt.s32.f32 %v810
        %v843 = vcvt.s32.f32 %v811
        %v844 = vcvt.s32.f32 %v812
        %v845 = vcvt.s32.f32 %v813
        %v846 = vcvt.s32.f32 %v814
        %v847 = vcvt.s32.f32 %v815
        %v848 = vcvt.s32.f32 %v816
        %v849 = vcvt.s32.f32 %v817
        %v850 = vcvt.s32.f32 %v818
        %v851 = vld [vmem:[%s3] sm:$0xff]
        %v852 = vld [vmem:[%s3 + $0x8] sm:$0xff]
        %v853 = vld [vmem:[%s3 + $0x10] sm:$0xff]
        %v854 = vld [vmem:[%s3 + $0x18] sm:$0xff]
        %v855 = vld [vmem:[%s3 + $0x20] sm:$0xff]
        %v856 = vld [vmem:[%s3 + $0x28] sm:$0xff]
        %v857 = vld [vmem:[%s3 + $0x30] sm:$0xff]
        %v858 = vld [vmem:[%s3 + $0x38] sm:$0xff]
        %v859 = vld [vmem:[%s3 + $0x40] sm:$0xff]
        %v860 = vld [vmem:[%s3 + $0x48] sm:$0xff]
        %v861 = vld [vmem:[%s3 + $0x50] sm:$0xff]
        %v862 = vld [vmem:[%s3 + $0x58] sm:$0xff]
        %v863 = vld [vmem:[%s3 + $0x60] sm:$0xff]
        %v864 = vld [vmem:[%s3 + $0x68] sm:$0xff]
        %v865 = vld [vmem:[%s3 + $0x70] sm:$0xff]
        %v866 = vld [vmem:[%s3 + $0x78] sm:$0xff]
        %v867 = vld [vmem:[%s3 + $0x80] sm:$0xff]
        %v868 = vld [vmem:[%s3 + $0x88] sm:$0xff]
        %v869 = vld [vmem:[%s3 + $0x90] sm:$0xff]
        %v870 = vld [vmem:[%s3 + $0x98] sm:$0xff]
        %v871 = vld [vmem:[%s3 + $0xa0] sm:$0xff]
        %v872 = vld [vmem:[%s3 + $0xa8] sm:$0xf]
        %vm873 = vcmask 359424
        %v875 = vsel %vm873, %v820, 0
        %v878 = vsel %vm873, %v822, 0
        %v881 = vsel %vm873, %v824, 0
        %v884 = vsel %vm873, %v826, 0
        %v887 = vsel %vm873, %v828, 0
        %v890 = vsel %vm873, %v830, 0
        %v893 = vsel %vm873, %v832, 0
        %v896 = vsel %vm873, %v834, 0
        %v899 = vsel %vm873, %v836, 0
        %v902 = vsel %vm873, %v838, 0
        %v905 = vsel %vm873, %v840, 0
        %v908 = vsel %vm873, %v842, 0
        %v911 = vsel %vm873, %v844, 0
        %v914 = vsel %vm873, %v846, 0
        %v917 = vsel %vm873, %v848, 0
        %v920 = vsel %vm873, %v850, 0
        %vm922 = vcmask 1043456
        %v924 = vsel %vm922, %v872, 0
        %926 = vmatpush.msra.mxu0 %v866
        %927 = vmatpush.msra.mxu0 %v865
        %928 = vmatpush.msra.mxu0 %v864
        %929 = vmatpush.msra.mxu0 %v863
        %930 = vmatpush.msra.mxu0 %v862
        %931 = vmatpush.msra.mxu0 %v861
        %932 = vmatpush.msra.mxu0 %v860
        %933 = vmatpush.msra.mxu0 %v859
        %934 = vmatpush.msra.mxu0 %v858
        %935 = vmatpush.msra.mxu0 %v857
        %936 = vmatpush.msra.mxu0 %v856
        %937 = vmatpush.msra.mxu0 %v855
        %938 = vmatpush.msra.mxu0 %v854
        %939 = vmatpush.msra.mxu0 %v853
        %940 = vmatpush.msra.mxu0 %v852
        %941 = vmatpush.msra.mxu0 %v851
        %942 = vmatmul.f32.gmra.mxu0 %v819
        %v943 = vpop.f32.mrf.mxu0
        %v944 = vadd.f32 0.0, %v943
        %945 = vmatmul.f32.gmra.mxu0 %v821
        %v946 = vpop.f32.mrf.mxu0
        %v947 = vadd.f32 0.0, %v946
        %948 = vmatmul.f32.gmra.mxu0 %v823
        %v949 = vpop.f32.mrf.mxu0
        %v950 = vadd.f32 0.0, %v949
        %951 = vmatmul.f32.gmra.mxu0 %v825
        %v952 = vpop.f32.mrf.mxu0
        %v953 = vadd.f32 0.0, %v952
        %954 = vmatmul.f32.gmra.mxu0 %v827
        %v955 = vpop.f32.mrf.mxu0
        %v956 = vadd.f32 0.0, %v955
        %957 = vmatmul.f32.gmra.mxu0 %v829
        %v958 = vpop.f32.mrf.mxu0
        %v959 = vadd.f32 0.0, %v958
        %960 = vmatmul.f32.gmra.mxu0 %v831
        %v961 = vpop.f32.mrf.mxu0
        %v962 = vadd.f32 0.0, %v961
        %963 = vmatmul.f32.gmra.mxu0 %v833
        %v964 = vpop.f32.mrf.mxu0
        %v965 = vadd.f32 0.0, %v964
        %966 = vmatmul.f32.gmra.mxu0 %v835
        %v967 = vpop.f32.mrf.mxu0
        %v968 = vadd.f32 0.0, %v967
        %969 = vmatmul.f32.gmra.mxu0 %v837
        %v970 = vpop.f32.mrf.mxu0
        %v971 = vadd.f32 0.0, %v970
        %972 = vmatmul.f32.gmra.mxu0 %v839
        %v973 = vpop.f32.mrf.mxu0
        %v974 = vadd.f32 0.0, %v973
        %975 = vmatmul.f32.gmra.mxu0 %v841
        %v976 = vpop.f32.mrf.mxu0
        %v977 = vadd.f32 0.0, %v976
        %978 = vmatmul.f32.gmra.mxu0 %v843
        %v979 = vpop.f32.mrf.mxu0
        %v980 = vadd.f32 0.0, %v979
        %981 = vmatmul.f32.gmra.mxu0 %v845
        %v982 = vpop.f32.mrf.mxu0
        %v983 = vadd.f32 0.0, %v982
        %984 = vmatmul.f32.gmra.mxu0 %v847
        %v985 = vpop.f32.mrf.mxu0
        %v986 = vadd.f32 0.0, %v985
        %987 = vmatmul.f32.gmra.mxu0 %v849
        %v988 = vpop.f32.mrf.mxu0
        %v989 = vadd.f32 0.0, %v988
        %990 = vdwg.mxu0
        %991 = vmatpush.msra.mxu0 0.0
        %992 = vmatpush.msra.mxu0 0.0
        %993 = vmatpush.msra.mxu0 0.0
        %994 = vmatpush.msra.mxu0 0.0
        %995 = vmatpush.msra.mxu0 0.0
        %996 = vmatpush.msra.mxu0 0.0
        %997 = vmatpush.msra.mxu0 0.0
        %998 = vmatpush.msra.mxu0 0.0
        %999 = vmatpush.msra.mxu0 0.0
        %1000 = vmatpush.msra.mxu0 0.0
        %1001 = vmatpush.msra.mxu0 %v924
        %1002 = vmatpush.msra.mxu0 %v871
        %1003 = vmatpush.msra.mxu0 %v870
        %1004 = vmatpush.msra.mxu0 %v869
        %1005 = vmatpush.msra.mxu0 %v868
        %1006 = vmatpush.msra.mxu0 %v867
        %1007 = vmatmul.f32.gmra.mxu0 %v875
        %v1008 = vpop.f32.mrf.mxu0
        %v1009 = vadd.f32 %v944, %v1008
        %1010 = vmatmul.f32.gmra.mxu0 %v878
        %v1011 = vpop.f32.mrf.mxu0
        %v1012 = vadd.f32 %v947, %v1011
        %1013 = vmatmul.f32.gmra.mxu0 %v881
        %v1014 = vpop.f32.mrf.mxu0
        %v1015 = vadd.f32 %v950, %v1014
        %1016 = vmatmul.f32.gmra.mxu0 %v884
        %v1017 = vpop.f32.mrf.mxu0
        %v1018 = vadd.f32 %v953, %v1017
        %1019 = vmatmul.f32.gmra.mxu0 %v887
        %v1020 = vpop.f32.mrf.mxu0
        %v1021 = vadd.f32 %v956, %v1020
        %1022 = vmatmul.f32.gmra.mxu0 %v890
        %v1023 = vpop.f32.mrf.mxu0
        %v1024 = vadd.f32 %v959, %v1023
        %1025 = vmatmul.f32.gmra.mxu0 %v893
        %v1026 = vpop.f32.mrf.mxu0
        %v1027 = vadd.f32 %v962, %v1026
        %1028 = vmatmul.f32.gmra.mxu0 %v896
        %v1029 = vpop.f32.mrf.mxu0
        %v1030 = vadd.f32 %v965, %v1029
        %1031 = vmatmul.f32.gmra.mxu0 %v899
        %v1032 = vpop.f32.mrf.mxu0
        %v1033 = vadd.f32 %v968, %v1032
        %1034 = vmatmul.f32.gmra.mxu0 %v902
        %v1035 = vpop.f32.mrf.mxu0
        %v1036 = vadd.f32 %v971, %v1035
        %1037 = vmatmul.f32.gmra.mxu0 %v905
        %v1038 = vpop.f32.mrf.mxu0
        %v1039 = vadd.f32 %v974, %v1038
        %1040 = vmatmul.f32.gmra.mxu0 %v908
        %v1041 = vpop.f32.mrf.mxu0
        %v1042 = vadd.f32 %v977, %v1041
        %1043 = vmatmul.f32.gmra.mxu0 %v911
        %v1044 = vpop.f32.mrf.mxu0
        %v1045 = vadd.f32 %v980, %v1044
        %1046 = vmatmul.f32.gmra.mxu0 %v914
        %v1047 = vpop.f32.mrf.mxu0
        %v1048 = vadd.f32 %v983, %v1047
        %1049 = vmatmul.f32.gmra.mxu0 %v917
        %v1050 = vpop.f32.mrf.mxu0
        %v1051 = vadd.f32 %v986, %v1050
        %1052 = vmatmul.f32.gmra.mxu0 %v920
        %v1053 = vpop.f32.mrf.mxu0
        %v1054 = vadd.f32 %v989, %v1053
        %1055 = vdwg.mxu0
        %vm1056 = vcmask 171008
        %v1058 = vsel %vm1056, %v221, 0
        %v1061 = vsel %vm1056, %v222, 0
        %v1064 = vsel %vm1056, %v223, 0
        %v1067 = vsel %vm1056, %v224, 0
        %v1070 = vsel %vm1056, %v225, 0
        %v1073 = vsel %vm1056, %v226, 0
        %v1076 = vsel %vm1056, %v227, 0
        %v1079 = vsel %vm1056, %v228, 0
        %v1082 = vsel %vm1056, %v229, 0
        %v1085 = vsel %vm1056, %v230, 0
        %v1088 = vsel %vm1056, %v231, 0
        %v1091 = vsel %vm1056, %v232, 0
        %v1094 = vsel %vm1056, %v233, 0
        %v1097 = vsel %vm1056, %v234, 0
        %v1100 = vsel %vm1056, %v235, 0
        %v1103 = vsel %vm1056, %v236, 0
        %vm1105 = vcmask 1044480
        %v1107 = vsel %vm1105, %v239, 0
        %1109 = vmatpush.msra.mxu0 0.0
        %1110 = vmatpush.msra.mxu0 0.0
        %1111 = vmatpush.msra.mxu0 0.0
        %1112 = vmatpush.msra.mxu0 0.0
        %1113 = vmatpush.msra.mxu0 0.0
        %1114 = vmatpush.msra.mxu0 0.0
        %1115 = vmatpush.msra.mxu0 0.0
        %1116 = vmatpush.msra.mxu0 0.0
        %1117 = vmatpush.msra.mxu0 0.0
        %1118 = vmatpush.msra.mxu0 0.0
        %1119 = vmatpush.msra.mxu0 0.0
        %1120 = vmatpush.msra.mxu0 0.0
        %1121 = vmatpush.msra.mxu0 0.0
        %1122 = vmatpush.msra.mxu0 %v1107
        %1123 = vmatpush.msra.mxu0 %v238
        %1124 = vmatpush.msra.mxu0 %v237
        %1125 = vmatmul.f32.gmra.mxu0 %v1058
        %v1126 = vpop.f32.mrf.mxu0
        %v1127 = vadd.f32 %v1009, %v1126
        %1128 = vmatmul.f32.gmra.mxu0 %v1061
        %v1129 = vpop.f32.mrf.mxu0
        %v1130 = vadd.f32 %v1012, %v1129
        %1131 = vmatmul.f32.gmra.mxu0 %v1064
        %v1132 = vpop.f32.mrf.mxu0
        %v1133 = vadd.f32 %v1015, %v1132
        %1134 = vmatmul.f32.gmra.mxu0 %v1067
        %v1135 = vpop.f32.mrf.mxu0
        %v1136 = vadd.f32 %v1018, %v1135
        %1137 = vmatmul.f32.gmra.mxu0 %v1070
        %v1138 = vpop.f32.mrf.mxu0
        %v1139 = vadd.f32 %v1021, %v1138
        %1140 = vmatmul.f32.gmra.mxu0 %v1073
        %v1141 = vpop.f32.mrf.mxu0
        %v1142 = vadd.f32 %v1024, %v1141
        %1143 = vmatmul.f32.gmra.mxu0 %v1076
        %v1144 = vpop.f32.mrf.mxu0
        %v1145 = vadd.f32 %v1027, %v1144
        %1146 = vmatmul.f32.gmra.mxu0 %v1079
        %v1147 = vpop.f32.mrf.mxu0
        %v1148 = vadd.f32 %v1030, %v1147
        %1149 = vmatmul.f32.gmra.mxu0 %v1082
        %v1150 = vpop.f32.mrf.mxu0
        %v1151 = vadd.f32 %v1033, %v1150
        %1152 = vmatmul.f32.gmra.mxu0 %v1085
        %v1153 = vpop.f32.mrf.mxu0
        %v1154 = vadd.f32 %v1036, %v1153
        %1155 = vmatmul.f32.gmra.mxu0 %v1088
        %v1156 = vpop.f32.mrf.mxu0
        %v1157 = vadd.f32 %v1039, %v1156
        %1158 = vmatmul.f32.gmra.mxu0 %v1091
        %v1159 = vpop.f32.mrf.mxu0
        %v1160 = vadd.f32 %v1042, %v1159
        %1161 = vmatmul.f32.gmra.mxu0 %v1094
        %v1162 = vpop.f32.mrf.mxu0
        %v1163 = vadd.f32 %v1045, %v1162
        %1164 = vmatmul.f32.gmra.mxu0 %v1097
        %v1165 = vpop.f32.mrf.mxu0
        %v1166 = vadd.f32 %v1048, %v1165
        %1167 = vmatmul.f32.gmra.mxu0 %v1100
        %v1168 = vpop.f32.mrf.mxu0
        %v1169 = vadd.f32 %v1051, %v1168
        %1170 = vmatmul.f32.gmra.mxu0 %v1103
        %v1171 = vpop.f32.mrf.mxu0
        %v1172 = vadd.f32 %v1054, %v1171
        %1173 = vdwg.mxu0
        %1174 = vst [vmem:[%s207] sm:$0xff] %v1127
        %1175 = vst [vmem:[%s207 + $0x8] sm:$0xff] %v1130
        %1176 = vst [vmem:[%s207 + $0x10] sm:$0xff] %v1133
        %1177 = vst [vmem:[%s207 + $0x18] sm:$0xff] %v1136
        %1178 = vst [vmem:[%s207 + $0x20] sm:$0xff] %v1139
        %1179 = vst [vmem:[%s207 + $0x28] sm:$0xff] %v1142
        %1180 = vst [vmem:[%s207 + $0x30] sm:$0xff] %v1145
        %1181 = vst [vmem:[%s207 + $0x38] sm:$0xff] %v1148
        %1182 = vst [vmem:[%s207 + $0x40] sm:$0xff] %v1151
        %1183 = vst [vmem:[%s207 + $0x48] sm:$0xff] %v1154
        %1184 = vst [vmem:[%s207 + $0x50] sm:$0xff] %v1157
        %1185 = vst [vmem:[%s207 + $0x58] sm:$0xff] %v1160
        %1186 = vst [vmem:[%s207 + $0x60] sm:$0xff] %v1163
        %1187 = vst [vmem:[%s207 + $0x68] sm:$0xff] %v1166
        %1188 = vst [vmem:[%s207 + $0x70] sm:$0xff] %v1169
        %1189 = vst [vmem:[%s207 + $0x78] sm:$0xff] %v1172
        %s1190 = sand.u32 %s120, 1
        %s1191 = scalar_lea.sflag [#allocation3], %s1190
        %s1192 = sand.u32 %s120, 1
        %s1193 = smul.addr %s1192, 128
        %s1194 = scalar_lea.vmem [#allocation2], %s1193
        // Predicated region
        $region37: #{data_embedding.1} parent=35 // pred_check
          %p1195 = pneg %p130
        $region38: #{data_embedding.1} parent=35 // pred_check_branch
          %1197 = sbr.rel (%p1195) target = $region40
        $region39: #{data_embedding.1} parent=35 // pred_region
          %s1198 = smul.u32 16, %s18
          %1200 = vsyncadd %s1191, 0
          %s1201 = smul.addr %s1198, 8
          %s1202 = scalar_lea.hbm %s4, %s1201
          %s1203 = sshll.u32 %s1194, 4
          %s1204 = int_to_ptr.vmem [resolvable:$true] %s1203
          %s1205 = sshll.u32 %s1202, 4
          %s1206 = int_to_ptr.hbm [resolvable:$true] %s1205
          %1211 = dma.vmem_to_hbm [thread:$0]  %s1204, 2048, %s1206, %s1191, 128, 128, 8
        $region40: #{data_embedding.1} parent=35 // pred_fallthru
          _
      $region36: #{data_embedding.1} parent=5 // pred_fallthru
        _
      %p1212 = scmp.le.s32.totalorder 2, %s13
      // Predicated region
      $region41: #{data_embedding.1} parent=5 // pred_check
        %p1213 = pneg %p1212
      $region42: #{data_embedding.1} parent=5 // pred_check_branch
        %1215 = sbr.rel (%p1213) target = $region44
      $region43: #{data_embedding.1} parent=5 // pred_region
        %s1216 = ssub.s32 %s13, 2
        // Predicated region
        $region45: #{data_embedding.1} parent=43 // pred_check
          %p1217 = pneg %p136
        $region46: #{data_embedding.1} parent=43 // pred_check_branch
          %1219 = sbr.rel (%p1217) target = $region48
        $region47: #{data_embedding.1} parent=43 // pred_region
          %s1220 = sand.u32 %s121, 1
          %s1221 = scalar_lea.sflag [#allocation3], %s1220
          %s1222 = sand.u32 %s121, 1
          %s1223 = smul.addr %s1222, 128
          %s1224 = scalar_lea.vmem [#allocation2], %s1223
          %1226 = dma.done %s1221, 2048
        $region48: #{data_embedding.1} parent=43 // pred_fallthru
          _
      $region44: #{data_embedding.1} parent=5 // pred_fallthru
        _
    $region6: #{data_embedding.1} parent=1 // loop_footer
      %s17 = sadd.s32 1, %s13
    $region7: #{data_embedding.1} parent=1 // loop_footer_branch
      %12 = sbr.rel target = $region3
    $region8: #{data_embedding.1} parent=1 // loop_exit
      _
    %1227 = vsyncpa [#allocation3], 1
    %s1228 = scalar_lea.sflag [#allocation3], 1
    %1229 = vsyncpa %s1228, 1

</llo_original>
